<compile_context>
chip_gen: v7x
topology: tpu7x:2x2x1
jax: 0.10.0
libtpu: 0.0.40
codegen_flags: <defaults>
</compile_context>

<pallas_src>
import functools

import jax
import jax.numpy as jnp
import numpy as np
from jax.experimental import pallas as pl
from jax.experimental.pallas import tpu as pltpu

_NEG_INF = -1e30
_LANES = 128
_SUBLANES = 8


def _round_up(n: int, m: int) -> int:
    return ((n + m - 1) // m) * m


# --------------------------------------------------------------------------- #
# Kernel
# --------------------------------------------------------------------------- #
def _policy_kernel(x_ref, w1_ref, b1_ref, w2_ref, b2_ref, o_ref, probs_ref,
                   *, action_dim, pack):
    # fc1: cast x f32->bf16 in-kernel (VPU op hidden under the DMA pipeline),
    # bf16 MXU matmul with f32 accumulation.
    x = x_ref[...].astype(jnp.bfloat16)
    h = jnp.dot(x, w1_ref[...], preferred_element_type=jnp.float32)
    h = jnp.maximum(h + b1_ref[...], 0.0)                 # bias + ReLU in f32

    # fc2: bf16 activations keep the second matmul a single MXU pass.
    logits = jnp.dot(h.astype(jnp.bfloat16), w2_ref[...],
                     preferred_element_type=jnp.float32)
    logits = logits + b2_ref[...]          # padded action columns carry -1e30

    # Numerically stable softmax over dim 1, all f32, exact divide so each
    # row sums to 1 to f32 precision (TRPO consumes these as a Categorical).
    m = jnp.max(logits, axis=1, keepdims=True)
    e = jnp.exp(logits - m)                # padded columns become exactly 0
    denom = jnp.sum(e, axis=1, keepdims=True)
    probs = e / denom

    if pack == 1:
        # Fallback path: padded, lane-dense output (wrapper slices it).
        o_ref[...] = probs.astype(o_ref.dtype)
    else:
        # Packed path: o[g, j*act + a] = probs[g*pack + j, a].
        # Round-trip probs through VMEM scratch, then gather every pack-th row
        # with a sublane-strided read and store it into its 8-lane segment of
        # the dense 128-lane output row.
        probs_ref[...] = probs
        n_g = o_ref.shape[0]
        for j in range(pack):                             # static, unrolled
            rows = probs_ref[pl.ds(j, n_g, stride=pack), :]      # (n_g, 128)
            o_ref[:, j * action_dim:(j + 1) * action_dim] = rows[:, :action_dim]


# --------------------------------------------------------------------------- #
# One-time probe: verify the strided-read packing construct lowers on this
# backend and produces the expected values. Falls back to padded output if not.
# --------------------------------------------------------------------------- #
def _pack_probe_kernel(x_ref, o_ref, tmp_ref, *, pack, act):
    tmp_ref[...] = x_ref[...]
    n_g = o_ref.shape[0]
    for j in range(pack):
        rows = tmp_ref[pl.ds(j, n_g, stride=pack), :]
        o_ref[:, j * act:(j + 1) * act] = rows[:, :act]


@functools.lru_cache(maxsize=1)
def _packed_path_available() -> bool:
    pack, act, n_g = 16, 8, 8
    tile = pack * n_g
    x = np.arange(tile * _LANES, dtype=np.float32).reshape(tile, _LANES)
    try:
        out = pl.pallas_call(
            functools.partial(_pack_probe_kernel, pack=pack, act=act),
            out_shape=jax.ShapeDtypeStruct((n_g, _LANES), jnp.float32),
            scratch_shapes=[pltpu.VMEM((tile, _LANES), jnp.float32)],
        )(jnp.asarray(x))
        out = np.asarray(jax.block_until_ready(out))
        want = x.reshape(n_g, pack, _LANES)[:, :, :act].reshape(n_g, pack * act)
        return bool(np.array_equal(out, want))
    except Exception:
        return False


# --------------------------------------------------------------------------- #
# Parameter prep (hoisted out of the per-step forward)
# --------------------------------------------------------------------------- #
def prepare_params(w1, b1, w2, b2):
    """One-time prep: pad the action dim to 128 lanes (zero W2 columns, -1e30
    bias entries so padded logits vanish under softmax), pre-cast matmul
    weights to bf16 and biases to f32. Weights are stored [in, out]
    (transpose of nn.Linear's [out, in])."""
    obs_dim, hidden_dim = w1.shape
    action_dim = w2.shape[1]
    act_pad = _round_up(action_dim, _LANES)

    w2_p = jnp.zeros((hidden_dim, act_pad), jnp.float32)
    w2_p = w2_p.at[:, :action_dim].set(w2.astype(jnp.float32))
    b2_p = jnp.full((1, act_pad), _NEG_INF, jnp.float32)
    b2_p = b2_p.at[:, :action_dim].set(jnp.reshape(b2, (1, action_dim)).astype(jnp.float32))

    return dict(
        w1=w1.astype(jnp.bfloat16),
        b1=jnp.reshape(b1, (1, hidden_dim)).astype(jnp.float32),
        w2=w2_p.astype(jnp.bfloat16),
        b2=b2_p,
        action_dim=int(action_dim),
    )


# --------------------------------------------------------------------------- #
# Forward
# --------------------------------------------------------------------------- #
def policy_net_forward(x, params, *, block_b=2048):
    """x: [B, obs_dim] f32, params from prepare_params -> [B, action_dim] f32 probs."""
    B, obs_dim = x.shape
    w1, b1, w2, b2 = params["w1"], params["b1"], params["w2"], params["b2"]
    action_dim = params["action_dim"]
    hidden_dim = w1.shape[1]
    act_pad = w2.shape[1]

    use_packed = (act_pad == _LANES
                  and action_dim < _LANES
                  and _LANES % action_dim == 0
                  and _packed_path_available())
    pack = (_LANES // action_dim) if use_packed else 1

    # Batch tiling: tile is a multiple of pack*8 so the packed out block keeps
    # (8,128) alignment; guarantee >=2 grid steps when the batch allows it so
    # the "parallel" axis actually splits across v7x's two TensorCores.
    quantum = pack * _SUBLANES
    b_min = _round_up(B, quantum)
    tile_cap = max(quantum, (block_b // quantum) * quantum)
    n_tiles = pl.cdiv(b_min, tile_cap)
    if b_min >= 2 * quantum:
        n_tiles = max(n_tiles, 2)
    tile_b = _round_up(pl.cdiv(b_min, n_tiles), quantum)
    n_tiles = pl.cdiv(b_min, tile_b)
    b_pad = tile_b * n_tiles

    x = x.astype(jnp.float32)              # bf16 cast happens inside the kernel
    if b_pad != B:
        x = jnp.pad(x, ((0, b_pad - B), (0, 0)))

    kernel = functools.partial(_policy_kernel, action_dim=action_dim, pack=pack)
    if use_packed:
        out_shape = jax.ShapeDtypeStruct((b_pad // pack, act_pad), jnp.float32)
        out_block = (tile_b // pack, act_pad)
        scratch = pltpu.VMEM((tile_b, act_pad), jnp.float32)
    else:
        out_shape = jax.ShapeDtypeStruct((b_pad, act_pad), jnp.float32)
        out_block = (tile_b, act_pad)
        scratch = pltpu.VMEM((_SUBLANES, _LANES), jnp.float32)   # unused dummy

    out = pl.pallas_call(
        kernel,
        out_shape=out_shape,
        grid=(n_tiles,),
        in_specs=[
            pl.BlockSpec((tile_b, obs_dim), lambda i: (i, 0)),      # x: batch-tiled
            pl.BlockSpec((obs_dim, hidden_dim), lambda i: (0, 0)),  # w1: resident
            pl.BlockSpec((1, hidden_dim), lambda i: (0, 0)),        # b1: resident
            pl.BlockSpec((hidden_dim, act_pad), lambda i: (0, 0)),  # w2: resident
            pl.BlockSpec((1, act_pad), lambda i: (0, 0)),           # b2: resident
        ],
        out_specs=pl.BlockSpec(out_block, lambda i: (i, 0)),
        scratch_shapes=[scratch],
        compiler_params=pltpu.CompilerParams(
            dimension_semantics=("parallel",)),   # batch axis splits on v7x
    )(x, w1, b1, w2, b2)

    if use_packed:
        # pack * action_dim == 128, so every stored lane is a real probability:
        # undoing the packing is a pure (metadata) reshape + batch-pad slice.
        return out.reshape(b_pad, action_dim)[:B]
    return out[:B, :action_dim]


# --------------------------------------------------------------------------- #
# Init + reference
# --------------------------------------------------------------------------- #
def init_params(key, obs_dim, hidden_dim, action_dim):
    """nn.Linear-style uniform(-1/sqrt(fan_in), +) init; weights as [in, out]."""
    k1, k2, k3, k4 = jax.random.split(key, 4)
    bound1 = 1.0 / jnp.sqrt(obs_dim)
    bound2 = 1.0 / jnp.sqrt(hidden_dim)
    w1 = jax.random.uniform(k1, (obs_dim, hidden_dim), jnp.float32, -bound1, bound1)
    b1 = jax.random.uniform(k2, (1, hidden_dim), jnp.float32, -bound1, bound1)
    w2 = jax.random.uniform(k3, (hidden_dim, action_dim), jnp.float32, -bound2, bound2)
    b2 = jax.random.uniform(k4, (1, action_dim), jnp.float32, -bound2, bound2)
    return w1, b1, w2, b2


def reference_forward(x, w1, b1, w2, b2):
    """Pure-JAX reference mirroring the kernel's numerics (bf16 matmul inputs,
    f32 accumulation / elementwise / softmax)."""
    f32 = jnp.float32
    xb = x.astype(jnp.bfloat16).astype(f32)
    w1b = w1.astype(jnp.bfloat16).astype(f32)
    w2b = w2.astype(jnp.bfloat16).astype(f32)
    h = jnp.maximum(xb @ w1b + b1.astype(f32), 0.0)
    hb = h.astype(jnp.bfloat16).astype(f32)
    logits = hb @ w2b + b2.astype(f32)
    return jax.nn.softmax(logits, axis=1)


# --------------------------------------------------------------------------- #
# Self-test
# --------------------------------------------------------------------------- #
if __name__ == "__main__":
    key = jax.random.PRNGKey(0)
    kx, kp, kx2 = jax.random.split(key, 3)

    batch, obs_dim, hidden_dim, action_dim = 2, 16, 32, 8
    x = jax.random.normal(kx, (batch, obs_dim), dtype=jnp.float32)
    w1, b1, w2, b2 = init_params(kp, obs_dim, hidden_dim, action_dim)
    params = prepare_params(w1, b1, w2, b2)      # one-time prep (hoisted)

    fwd = jax.jit(functools.partial(policy_net_forward, params=params))

    # Small-shape check (single grid step, padded batch).
    out = jax.block_until_ready(fwd(x))
    ref = reference_forward(x, w1, b1, w2, b2)
    assert out.shape == (batch, action_dim)
    assert jnp.allclose(out, ref, atol=2e-3, rtol=2e-3)
    assert jnp.allclose(jnp.sum(out, axis=1), 1.0, atol=1e-4)

    # Multi-tile check: exercises the >=2-step batch grid, packing and padding
    # (1000 rows -> 2 grid steps of 512 with 24 padded rows).
    big_b = 1000
    x_big = jax.random.normal(kx2, (big_b, obs_dim), dtype=jnp.float32)
    out_big = jax.block_until_ready(fwd(x_big))
    ref_big = reference_forward(x_big, w1, b1, w2, b2)
    assert out_big.shape == (big_b, action_dim)
    assert jnp.allclose(out_big, ref_big, atol=2e-3, rtol=2e-3)
    assert jnp.allclose(jnp.sum(out_big, axis=1), 1.0, atol=1e-4)

    print("KERNEL_OK")
</pallas_src>

<mosaic_0001>
module attributes {stable_mosaic.version = 11 : i64} {
  func.func @_policy_kernel(%arg0: i32, %arg1: memref<8x16xf32, #tpu.memory_space<vmem>>, %arg2: memref<16x32xbf16, #tpu.memory_space<vmem>>, %arg3: memref<1x32xf32, #tpu.memory_space<vmem>>, %arg4: memref<32x128xbf16, #tpu.memory_space<vmem>>, %arg5: memref<1x128xf32, #tpu.memory_space<vmem>>, %arg6: memref<8x128xf32, #tpu.memory_space<vmem>>, %arg7: memref<8x128xf32, #tpu.memory_space<vmem>>) attributes {dimension_semantics = [#tpu.dimension_semantics<parallel>], iteration_bounds = array<i64: 1>, scalar_prefetch = 0 : i64, scratch_operands = 1 : i64, tpu.core_type = #tpu.core_type<tc>, window_params = [{transform_indices = @transform_0, window_bounds = array<i64: 8, 16>}, {pipeline_mode = #tpu.pipeline_mode<synchronous>, transform_indices = @transform_1, window_bounds = array<i64: 16, 32>}, {pipeline_mode = #tpu.pipeline_mode<synchronous>, transform_indices = @transform_2, window_bounds = array<i64: 1, 32>}, {pipeline_mode = #tpu.pipeline_mode<synchronous>, transform_indices = @transform_3, window_bounds = array<i64: 32, 128>}, {pipeline_mode = #tpu.pipeline_mode<synchronous>, transform_indices = @transform_4, window_bounds = array<i64: 1, 128>}, {transform_indices = @transform_5, window_bounds = array<i64: 8, 128>}]} {
    %c0 = arith.constant 0 : index
    %c0_0 = arith.constant 0 : index
    %0 = vector.load %arg1[%c0, %c0_0] : memref<8x16xf32, #tpu.memory_space<vmem>>, vector<8x16xf32>
    %1 = arith.truncf %0 : vector<8x16xf32> to vector<8x16xbf16>
    %c0_1 = arith.constant 0 : index
    %c0_2 = arith.constant 0 : index
    %2 = vector.load %arg2[%c0_1, %c0_2] : memref<16x32xbf16, #tpu.memory_space<vmem>>, vector<16x32xbf16>
    %cst = arith.constant dense<0.000000e+00> : vector<8x32xf32>
    %3 = tpu.matmul %1, %2, %cst {dimension_numbers = #tpu.dot_dimension_numbers<[1], [0], [0], [1], [0, 0, 1, 1], [], []>} : vector<8x16xbf16>, vector<16x32xbf16>, vector<8x32xf32> -> vector<8x32xf32>
    %c0_3 = arith.constant 0 : index
    %c0_4 = arith.constant 0 : index
    %4 = vector.load %arg3[%c0_3, %c0_4] : memref<1x32xf32, #tpu.memory_space<vmem>>, vector<1x32xf32>
    %5 = vector.broadcast %4 : vector<1x32xf32> to vector<8x32xf32>
    %6 = arith.addf %3, %5 : vector<8x32xf32>
    %cst_5 = arith.constant 0.000000e+00 : f32
    %7 = vector.broadcast %cst_5 : f32 to vector<8x32xf32>
    %8 = arith.maximumf %6, %7 : vector<8x32xf32>
    %9 = arith.truncf %8 : vector<8x32xf32> to vector<8x32xbf16>
    %c0_6 = arith.constant 0 : index
    %c0_7 = arith.constant 0 : index
    %10 = vector.load %arg4[%c0_6, %c0_7] : memref<32x128xbf16, #tpu.memory_space<vmem>>, vector<32x128xbf16>
    %cst_8 = arith.constant dense<0.000000e+00> : vector<8x128xf32>
    %11 = tpu.matmul %9, %10, %cst_8 {dimension_numbers = #tpu.dot_dimension_numbers<[1], [0], [0], [1], [0, 0, 1, 1], [], []>} : vector<8x32xbf16>, vector<32x128xbf16>, vector<8x128xf32> -> vector<8x128xf32>
    %c0_9 = arith.constant 0 : index
    %c0_10 = arith.constant 0 : index
    %12 = vector.load %arg5[%c0_9, %c0_10] : memref<1x128xf32, #tpu.memory_space<vmem>>, vector<1x128xf32>
    %13 = vector.broadcast %12 : vector<1x128xf32> to vector<8x128xf32>
    %14 = arith.addf %11, %13 : vector<8x128xf32>
    %cst_11 = arith.constant dense<0xFF800000> : vector<8xf32>
    %15 = vector.multi_reduction <maximumf>, %14, %cst_11 [1] : vector<8x128xf32> to vector<8xf32>
    %16 = vector.shape_cast %15 : vector<8xf32> to vector<8x1xf32>
    %17 = vector.broadcast %16 : vector<8x1xf32> to vector<8x128xf32>
    %18 = arith.subf %14, %17 : vector<8x128xf32>
    %19 = math.exp %18 : vector<8x128xf32>
    %cst_12 = arith.constant dense<0.000000e+00> : vector<8xf32>
    %20 = vector.multi_reduction <add>, %19, %cst_12 [1] : vector<8x128xf32> to vector<8xf32>
    %21 = vector.shape_cast %20 : vector<8xf32> to vector<8x1xf32>
    %22 = vector.broadcast %21 : vector<8x1xf32> to vector<8x128xf32>
    %23 = arith.divf %19, %22 : vector<8x128xf32>
    %c0_13 = arith.constant 0 : index
    %c0_14 = arith.constant 0 : index
    %24 = vector.load %arg6[%c0_13, %c0_14] : memref<8x128xf32, #tpu.memory_space<vmem>>, vector<8x128xf32>
    tpu.vector_store %arg6[%c0_13, %c0_14], %23 {strides = array<i32>} : memref<8x128xf32, #tpu.memory_space<vmem>>, vector<8x128xf32>,
    return
  }
  func.func @transform_0(%arg0: i32) -> (i32, i32) {
    %c0_i32 = arith.constant 0 : i32
    %c0_i32_0 = arith.constant 0 : i32
    return %arg0, %c0_i32 : i32, i32
  }
  func.func @transform_1(%arg0: i32) -> (i32, i32) {
    %c0_i32 = arith.constant 0 : i32
    %c0_i32_0 = arith.constant 0 : i32
    %c0_i32_1 = arith.constant 0 : i32
    return %c0_i32, %c0_i32_0 : i32, i32
  }
  func.func @transform_2(%arg0: i32) -> (i32, i32) {
    %c0_i32 = arith.constant 0 : i32
    %c0_i32_0 = arith.constant 0 : i32
    %c0_i32_1 = arith.constant 0 : i32
    return %c0_i32, %c0_i32_0 : i32, i32
  }
  func.func @transform_3(%arg0: i32) -> (i32, i32) {
    %c0_i32 = arith.constant 0 : i32
    %c0_i32_0 = arith.constant 0 : i32
    %c0_i32_1 = arith.constant 0 : i32
    return %c0_i32, %c0_i32_0 : i32, i32
  }
  func.func @transform_4(%arg0: i32) -> (i32, i32) {
    %c0_i32 = arith.constant 0 : i32
    %c0_i32_0 = arith.constant 0 : i32
    %c0_i32_1 = arith.constant 0 : i32
    return %c0_i32, %c0_i32_0 : i32, i32
  }
  func.func @transform_5(%arg0: i32) -> (i32, i32) {
    %c0_i32 = arith.constant 0 : i32
    %c0_i32_0 = arith.constant 0 : i32
    return %arg0, %c0_i32 : i32, i32
  }
}

</mosaic_0001>

<llo_original>
// kernel: policy_net_forward.1
$region0: #{policy_net_forward.1}
  #allocation0 [shape = 'u32[]', space=smem, size = 0x4, offset = 0x4, fixed_abs, tag = 'smem constant byte address 0x4 - core index']
  #allocation1 [shape = 'u32[144,128]{1,0:T(1,128)}', space=vmem, size = 0x12000, scoped, tag = 'internal scratch']
  #allocation2 [shape = 'f32[8,128]{1,0:T(8,128)}', space=vmem, size = 0x1000, scoped, tag = 'scratch operand']
  %s0 = inlined_call_operand.vmem [shape: f32[8,16], index: 0, kind: input, shape index: {}]
  %s1 = inlined_call_operand.vmem [shape: bf16[16,32], index: 1, kind: input, shape index: {}]
  %s2 = inlined_call_operand.vmem [shape: f32[1,32], index: 2, kind: input, shape index: {}]
  %s3 = inlined_call_operand.vmem [shape: bf16[32,128], index: 3, kind: input, shape index: {}]
  %s4 = inlined_call_operand.vmem [shape: f32[1,128], index: 4, kind: input, shape index: {}]
  %s5 = inlined_call_operand.vmem [shape: f32[8,128], index: 5, kind: output, shape index: {}]
  %s6 = sld [smem:[#allocation0]]
  $region30: #{policy_net_forward.1} parent=0
    _
  %s8 = ssub.s32 1, %s6
  %s9 = scalar_select 0, %s8, %s6
  // Predicated region
  $region2: #{policy_net_forward.1} parent=0 // pred_check
    _
  $region3: #{policy_net_forward.1} parent=0 // pred_check_branch
    %11 = sbr.rel (0) target = $region5
  $region4: #{policy_net_forward.1} parent=0 // pred_region
    _
  $region5: #{policy_net_forward.1} parent=0 // pred_fallthru
    _
  // Predicated region
  $region6: #{policy_net_forward.1} parent=0 // pred_check
    _
  $region7: #{policy_net_forward.1} parent=0 // pred_check_branch
    %13 = sbr.rel (0) target = $region9
  $region8: #{policy_net_forward.1} parent=0 // pred_region
    _
  $region9: #{policy_net_forward.1} parent=0 // pred_fallthru
    _
  // Predicated region
  $region10: #{policy_net_forward.1} parent=0 // pred_check
    _
  $region11: #{policy_net_forward.1} parent=0 // pred_check_branch
    %15 = sbr.rel (0) target = $region13
  $region12: #{policy_net_forward.1} parent=0 // pred_region
    _
  $region13: #{policy_net_forward.1} parent=0 // pred_fallthru
    _
  // Predicated region
  $region14: #{policy_net_forward.1} parent=0 // pred_check
    _
  $region15: #{policy_net_forward.1} parent=0 // pred_check_branch
    %17 = sbr.rel (0) target = $region17
  $region16: #{policy_net_forward.1} parent=0 // pred_region
    _
  $region17: #{policy_net_forward.1} parent=0 // pred_fallthru
    _
  // Predicated region
  $region18: #{policy_net_forward.1} parent=0 // pred_check
    _
  $region19: #{policy_net_forward.1} parent=0 // pred_check_branch
    %19 = sbr.rel (0) target = $region21
  $region20: #{policy_net_forward.1} parent=0 // pred_region
    _
  $region21: #{policy_net_forward.1} parent=0 // pred_fallthru
    _
  %v21 = vld [vmem:[%s0] sm:$0xff]
  %v22 = vpack.c.bf16 %v21, %v21
  %v23 = vld [vmem:[%s1] sm:$0xf]
  %v24 = vld [vmem:[%s1 + $0x4] sm:$0xf]
  %v25 = vld [vmem:[%s2] sm:$0x1]
  %v27 = vlaneseq
  %v28 = vshrl.u32 %v27, 7
  %v29 = vsub.s32 0, %v28
  %v30 = vrot.slane %v25, %v29
  %v34 = vunpack.c.l.b16 %v23
  %v35 = vunpack.c.l.b16 %v24
  %v36 = vpack.c.b16 %v35, %v34
  %vm38 = vcmask 130048
  %v40 = vsel %vm38, %v22, 0
  %42 = vmatprep.subr.bf16.mxu0 0
  %43 = vmatpush1.bf16.msra.mxu0 %v36
  %44 = vmatprep.subr.bf16.mxu0 0
  %45 = vmatpush1.bf16.msra.mxu0 0
  %46 = vmatprep.subr.bf16.mxu0 0
  %47 = vmatpush1.bf16.msra.mxu0 0
  %48 = vmatprep.subr.bf16.mxu0 0
  %49 = vmatpush1.bf16.msra.mxu0 0
  %50 = vmatprep.subr.bf16.mxu0 0
  %51 = vmatpush1.bf16.msra.mxu0 0
  %52 = vmatprep.subr.bf16.mxu0 0
  %53 = vmatpush1.bf16.msra.mxu0 0
  %54 = vmatprep.subr.bf16.mxu0 0
  %55 = vmatpush1.bf16.msra.mxu0 0
  %56 = vmatprep.subr.bf16.mxu0 0
  %57 = vmatpush1.bf16.msra.mxu0 0
  %58 = vmatprep.subr.bf16.mxu0 0
  %59 = vmatpush1.bf16.msra.mxu0 0
  %60 = vmatprep.subr.bf16.mxu0 0
  %61 = vmatpush1.bf16.msra.mxu0 0
  %62 = vmatprep.subr.bf16.mxu0 0
  %63 = vmatpush1.bf16.msra.mxu0 0
  %64 = vmatprep.subr.bf16.mxu0 0
  %65 = vmatpush1.bf16.msra.mxu0 0
  %66 = vmatprep.subr.bf16.mxu0 0
  %67 = vmatpush1.bf16.msra.mxu0 0
  %68 = vmatprep.subr.bf16.mxu0 0
  %69 = vmatpush1.bf16.msra.mxu0 0
  %70 = vmatprep.subr.bf16.mxu0 0
  %71 = vmatpush1.bf16.msra.mxu0 0
  %72 = vmatprep.subr.bf16.mxu0 0
  %73 = vmatpush1.bf16.msra.mxu0 0
  %74 = vmatprep.mubr.bf16.mxu0 0
  %75 = vmatmul.mubr.bf16.gmra.mrb[0].mxu0 %v40
  %v76 = vpop.f32.mrb[0].mxu0
  %v77 = vadd.f32 %v30, %v76
  %v78 = vpop.f32.mrb[0].mxu0
  %v79 = vpop.f32.mrb[0].mxu0
  %v80 = vpop.f32.mrb[0].mxu0
  %81 = vdwg.mxu0
  %v82 = vmax.f32 %v77, 0.0
  %v83 = vpack.c.bf16 %v82, %v82
  %v84 = vld [vmem:[%s3] sm:$0xf]
  %v85 = vld [vmem:[%s3 + $0x4] sm:$0xf]
  %v86 = vld [vmem:[%s3 + $0x8] sm:$0xf]
  %v87 = vld [vmem:[%s3 + $0xc] sm:$0xf]
  %v88 = vld [vmem:[%s4] sm:$0x1]
  %v90 = vlaneseq
  %v91 = vshrl.u32 %v90, 7
  %v92 = vsub.s32 0, %v91
  %v93 = vrot.slane %v88, %v92
  %v99 = vunpack.c.l.b16 %v84
  %v100 = vunpack.c.l.b16 %v85
  %v101 = vunpack.c.l.b16 %v86
  %v102 = vunpack.c.l.b16 %v87
  %v103 = vpack.c.b16 %v100, %v99
  %v104 = vpack.c.b16 %v102, %v101
  %vm107 = vcmask 261120
  %v109 = vsel %vm107, %v83, 0
  %111 = vmatprep.subr.bf16.mxu0 0
  %112 = vmatpush1.bf16.msra.mxu0 %v103
  %113 = vmatprep.subr.bf16.mxu0 0
  %114 = vmatpush1.bf16.msra.mxu0 %v104
  %115 = vmatprep.subr.bf16.mxu0 0
  %116 = vmatpush1.bf16.msra.mxu0 0
  %117 = vmatprep.subr.bf16.mxu0 0
  %118 = vmatpush1.bf16.msra.mxu0 0
  %119 = vmatprep.subr.bf16.mxu0 0
  %120 = vmatpush1.bf16.msra.mxu0 0
  %121 = vmatprep.subr.bf16.mxu0 0
  %122 = vmatpush1.bf16.msra.mxu0 0
  %123 = vmatprep.subr.bf16.mxu0 0
  %124 = vmatpush1.bf16.msra.mxu0 0
  %125 = vmatprep.subr.bf16.mxu0 0
  %126 = vmatpush1.bf16.msra.mxu0 0
  %127 = vmatprep.subr.bf16.mxu0 0
  %128 = vmatpush1.bf16.msra.mxu0 0
  %129 = vmatprep.subr.bf16.mxu0 0
  %130 = vmatpush1.bf16.msra.mxu0 0
  %131 = vmatprep.subr.bf16.mxu0 0
  %132 = vmatpush1.bf16.msra.mxu0 0
  %133 = vmatprep.subr.bf16.mxu0 0
  %134 = vmatpush1.bf16.msra.mxu0 0
  %135 = vmatprep.subr.bf16.mxu0 0
  %136 = vmatpush1.bf16.msra.mxu0 0
  %137 = vmatprep.subr.bf16.mxu0 0
  %138 = vmatpush1.bf16.msra.mxu0 0
  %139 = vmatprep.subr.bf16.mxu0 0
  %140 = vmatpush1.bf16.msra.mxu0 0
  %141 = vmatprep.subr.bf16.mxu0 0
  %142 = vmatpush1.bf16.msra.mxu0 0
  %143 = vmatprep.mubr.bf16.mxu0 0
  %144 = vmatmul.mubr.bf16.gmra.mrb[0].mxu0 %v109
  %v145 = vpop.f32.mrb[0].mxu0
  %v146 = vadd.f32 %v93, %v145
  %v147 = vpop.f32.mrb[0].mxu0
  %v148 = vpop.f32.mrb[0].mxu0
  %v149 = vpop.f32.mrb[0].mxu0
  %150 = vdwg.mxu0
  %151 = vmax.xlane.f32.xlu0 %v146
  %v152 = vpop.xlane.xlu0 %151
  %v153 = vsub.f32 %v146, %v152
  %v154 = vmul.f32 %v153, 1.442695
  %v155 = vpow.pop %v154
  %156 = vadd.xlane.f32.xlu0 %v155
  %v157 = vpop.xlane.xlu0 %156
  %v158 = vrcp.pop %v157
  %v159 = vmul.f32 %v155, %v158
  %160 = vst [vmem:[%s5] sm:$0xff] %v159
  // Predicated region
  $region22: #{policy_net_forward.1} parent=0 // pred_check
    _
  $region23: #{policy_net_forward.1} parent=0 // pred_check_branch
    %162 = sbr.rel (0) target = $region25
  $region24: #{policy_net_forward.1} parent=0 // pred_region
    _
  $region25: #{policy_net_forward.1} parent=0 // pred_fallthru
    _
  // Predicated region
  $region26: #{policy_net_forward.1} parent=0 // pred_check
    _
  $region27: #{policy_net_forward.1} parent=0 // pred_check_branch
    %164 = sbr.rel (0) target = $region29
  $region28: #{policy_net_forward.1} parent=0 // pred_region
    _
  $region29: #{policy_net_forward.1} parent=0 // pred_fallthru
    _

</llo_original>
